<compile_context>
chip_gen: v6e
topology: v6e:2x2x1
jax: 0.10.0
libtpu: 0.0.40
codegen_flags: <defaults>
</compile_context>

<pallas_src>
import functools

import jax
import jax.numpy as jnp
from jax.experimental import pallas as pl
from jax.experimental.pallas import tpu as pltpu


def _decomp_kernel(x_ref, season_ref, trend_ref, xh_ref, *, k, p):
    """One (L, TN) slab: trend = zero-padded moving average, season = x - trend.

    x_ref:      (L, TN)        input tile (x.dtype)
    season_ref: (L, TN)        output
    trend_ref:  (L, TN)        output
    xh_ref:     (L + 2p, TN)   VMEM scratch in x.dtype; zero halo built in-kernel
    """
    L = season_ref.shape[0]
    TN = season_ref.shape[1]

    # Build the zero halo (AvgPool1d zero padding) in VMEM — no HBM pad pass.
    if p > 0:
        halo = jnp.zeros((p, TN), dtype=xh_ref.dtype)
        xh_ref[pl.ds(0, p), :] = halo
        xh_ref[pl.ds(p + L, p), :] = halo
    xh_ref[pl.ds(p, L), :] = x_ref[...]

    # k shifted VPU adds over the halo'd scratch. Per-shift ref loads keep the
    # live set to {acc, one slice}; data stays packed in x.dtype in VMEM and is
    # cast to f32 only at the add (f32 accumulation for precision).
    acc = xh_ref[pl.ds(0, L), :].astype(jnp.float32)
    for j in range(1, k):
        acc = acc + xh_ref[pl.ds(j, L), :].astype(jnp.float32)
    trend = acc * jnp.float32(1.0 / k)           # count_include_pad=True -> always /k

    trend_ref[...] = trend.astype(trend_ref.dtype)
    season_ref[...] = (x_ref[...].astype(jnp.float32) - trend).astype(season_ref.dtype)


def _vmem_capacity_bytes():
    try:
        cap = getattr(pltpu.get_tpu_info(), "vmem_capacity_bytes", None)
        if cap:
            return int(cap)
    except Exception:
        pass
    return 64 * 1024 * 1024  # conservative default (v7x per-core VMEM)


def _round_up(x, m):
    return ((x + m - 1) // m) * m


def _lane_tile_cap(L, p, itemsize, budget):
    # Per lane column:
    #   double-buffered pipeline tiles (in + season + trend) : 2 * 3 * L * itemsize
    #   halo'd scratch (single buffer)                        : (L + 2p) * itemsize
    #   f32 compute temporaries (acc, trend, slice window)    : ~3 * L * 4
    per_lane = 2 * 3 * L * itemsize + (L + 2 * p) * itemsize + 3 * L * 4
    cap = (budget // per_lane) // 128 * 128
    return max(128, int(cap))


def series_decomp(x, kernel_size, *, lane_tile=None):
    """x: (B, L, C). Returns (seasonality, trend), both (B, L, C)."""
    if kernel_size % 2 != 1:
        raise ValueError(
            "series_decomp Pallas kernel supports odd kernel_size only "
            "(even k changes AvgPool1d output length to L-1).")
    B, L, C = x.shape
    k = kernel_size
    p = (k - 1) // 2
    itemsize = jnp.dtype(x.dtype).itemsize

    # Generation-aware VMEM budgeting (v7x: 64 MiB, v5e/v6e: 128 MiB).
    vmem_cap = _vmem_capacity_bytes()
    budget = vmem_cap // 2                                   # 32 MiB v7x / 64 MiB v5e-v6e
    vmem_limit = int(min(vmem_cap - 8 * 1024 * 1024, (vmem_cap * 3) // 4))
    cap = _lane_tile_cap(L, p, itemsize, budget)
    if lane_tile is not None:
        cap = max(128, int(lane_tile) // 128 * 128)

    kernel = functools.partial(_decomp_kernel, k=k, p=p)

    if C % 128 == 0:
        # ---------------- fast path: no layout plumbing ----------------
        m = C // 128
        divisors = [128 * d for d in range(1, m + 1) if m % d == 0]
        cands = [t for t in divisors if t <= cap]
        tn = max(cands) if cands else 128
        # Keep >= 2 grid steps when the problem allows (v7x megacore sharding).
        if B * (C // tn) < 2:
            smaller = [t for t in divisors if t < tn and B * (C // t) >= 2]
            if smaller:
                tn = max(smaller)

        grid = (B, C // tn)
        grid_spec = pltpu.PrefetchScalarGridSpec(
            num_scalar_prefetch=0,
            grid=grid,
            in_specs=[
                pl.BlockSpec((pl.Squeezed(), L, tn), lambda b, c: (b, 0, c)),
            ],
            out_specs=[
                pl.BlockSpec((pl.Squeezed(), L, tn), lambda b, c: (b, 0, c)),
                pl.BlockSpec((pl.Squeezed(), L, tn), lambda b, c: (b, 0, c)),
            ],
            scratch_shapes=[pltpu.VMEM((L + 2 * p, tn), x.dtype)],
        )
        season, trend = pl.pallas_call(
            kernel,
            out_shape=(
                jax.ShapeDtypeStruct((B, L, C), x.dtype),
                jax.ShapeDtypeStruct((B, L, C), x.dtype),
            ),
            grid_spec=grid_spec,
            compiler_params=pltpu.CompilerParams(
                dimension_semantics=("parallel", "parallel"),
                vmem_limit_bytes=vmem_limit,
            ),
        )(x)
        return season, trend

    # ---------------- general path: fold (B, C) into the lane axis ----------------
    N = B * C
    xt = jnp.transpose(x, (1, 0, 2)).reshape(L, N)           # (L, B*C)
    n128 = _round_up(N, 128)
    tn = min(cap, n128)
    if tn >= n128 and n128 >= 256:
        tn = _round_up(n128 // 2, 128)                       # >= 2 steps for v7x megacore
    n_pad = _round_up(N, tn)
    xp = jnp.pad(xt, ((0, 0), (0, n_pad - N)))               # lane padding only (no L halo)

    grid = (n_pad // tn,)
    grid_spec = pltpu.PrefetchScalarGridSpec(
        num_scalar_prefetch=0,
        grid=grid,
        in_specs=[pl.BlockSpec((L, tn), lambda i: (0, i))],
        out_specs=[
            pl.BlockSpec((L, tn), lambda i: (0, i)),          # seasonality slab
            pl.BlockSpec((L, tn), lambda i: (0, i)),          # trend slab
        ],
        scratch_shapes=[pltpu.VMEM((L + 2 * p, tn), x.dtype)],
    )
    season_f, trend_f = pl.pallas_call(
        kernel,
        out_shape=(
            jax.ShapeDtypeStruct((L, n_pad), x.dtype),
            jax.ShapeDtypeStruct((L, n_pad), x.dtype),
        ),
        grid_spec=grid_spec,
        compiler_params=pltpu.CompilerParams(
            dimension_semantics=("parallel",),
            vmem_limit_bytes=vmem_limit,
        ),
    )(xp)

    season = jnp.transpose(season_f[:, :N].reshape(L, B, C), (1, 0, 2))
    trend = jnp.transpose(trend_f[:, :N].reshape(L, B, C), (1, 0, 2))
    return season, trend


def _reference(x, kernel_size):
    """Pure-JAX reference matching PyTorch AvgPool1d(k, stride=1, pad=(k-1)//2)."""
    B, L, C = x.shape
    p = (kernel_size - 1) // 2
    xpad = jnp.pad(x, ((0, 0), (p, p), (0, 0)))               # zero pad along L
    windows = jnp.stack([xpad[:, j:j + L, :] for j in range(kernel_size)], axis=0)
    trend = jnp.sum(windows, axis=0) / jnp.float32(kernel_size)
    return x - trend, trend


if __name__ == "__main__":
    key = jax.random.PRNGKey(0)
    cases = [
        (2, 16, 8, 5),      # general (lane-fold) path, small odd-ish C
        (2, 16, 8, 25),     # window larger than sequence (halo > L/2)
        (2, 12, 256, 5),    # fast path: C % 128 == 0, no transposes
    ]
    for (B, L, C, k) in cases:
        key, sub = jax.random.split(key)
        x = jax.random.normal(sub, (B, L, C), dtype=jnp.float32)

        season, trend = series_decomp(x, k)
        season = jax.block_until_ready(season)
        trend = jax.block_until_ready(trend)

        season_ref, trend_ref = _reference(x, k)
        assert season.shape == (B, L, C) and trend.shape == (B, L, C)
        assert jnp.allclose(trend, trend_ref, atol=1e-5, rtol=1e-5), "trend mismatch"
        assert jnp.allclose(season, season_ref, atol=1e-5, rtol=1e-5), "seasonality mismatch"
        assert jnp.allclose(season + trend, x, atol=1e-5, rtol=1e-5), "decomposition not exact"

    print("KERNEL_OK")
</pallas_src>

<mosaic_0001>
module attributes {stable_mosaic.version = 11 : i64} {
  func.func @_decomp_kernel(%arg0: i32, %arg1: memref<16x128xf32, #tpu.memory_space<vmem>>, %arg2: memref<16x128xf32, #tpu.memory_space<vmem>>, %arg3: memref<16x128xf32, #tpu.memory_space<vmem>>, %arg4: memref<20x128xf32, #tpu.memory_space<vmem>>) attributes {dimension_semantics = [#tpu.dimension_semantics<parallel>], iteration_bounds = array<i64: 1>, scalar_prefetch = 0 : i64, scratch_operands = 1 : i64, tpu.core_type = #tpu.core_type<tc>, window_params = [{transform_indices = @transform_0, window_bounds = array<i64: 16, 128>}, {transform_indices = @transform_1, window_bounds = array<i64: 16, 128>}, {transform_indices = @transform_2, window_bounds = array<i64: 16, 128>}]} {
    %cst = arith.constant 0.000000e+00 : f32
    %0 = vector.broadcast %cst : f32 to vector<2x128xf32>
    %c0 = arith.constant 0 : index
    %c0_0 = arith.constant 0 : index
    %1 = vector.load %arg4[%c0, %c0_0] : memref<20x128xf32, #tpu.memory_space<vmem>>, vector<2x128xf32>
    tpu.vector_store %arg4[%c0, %c0_0], %0 {strides = array<i32>} : memref<20x128xf32, #tpu.memory_space<vmem>>, vector<2x128xf32>,
    %c18 = arith.constant 18 : index
    %c0_1 = arith.constant 0 : index
    %2 = vector.load %arg4[%c18, %c0_1] : memref<20x128xf32, #tpu.memory_space<vmem>>, vector<2x128xf32>
    tpu.vector_store %arg4[%c18, %c0_1], %0 {strides = array<i32>} : memref<20x128xf32, #tpu.memory_space<vmem>>, vector<2x128xf32>,
    %c0_2 = arith.constant 0 : index
    %c0_3 = arith.constant 0 : index
    %3 = vector.load %arg1[%c0_2, %c0_3] : memref<16x128xf32, #tpu.memory_space<vmem>>, vector<16x128xf32>
    %c2 = arith.constant 2 : index
    %c0_4 = arith.constant 0 : index
    %4 = vector.load %arg4[%c2, %c0_4] : memref<20x128xf32, #tpu.memory_space<vmem>>, vector<16x128xf32>
    tpu.vector_store %arg4[%c2, %c0_4], %3 {strides = array<i32>} : memref<20x128xf32, #tpu.memory_space<vmem>>, vector<16x128xf32>,
    %c0_5 = arith.constant 0 : index
    %c0_6 = arith.constant 0 : index
    %5 = vector.load %arg4[%c0_5, %c0_6] : memref<20x128xf32, #tpu.memory_space<vmem>>, vector<16x128xf32>
    %c1 = arith.constant 1 : index
    %c0_7 = arith.constant 0 : index
    %6 = vector.load %arg4[%c1, %c0_7] : memref<20x128xf32, #tpu.memory_space<vmem>>, vector<16x128xf32>
    %7 = arith.addf %5, %6 : vector<16x128xf32>
    %c2_8 = arith.constant 2 : index
    %c0_9 = arith.constant 0 : index
    %8 = vector.load %arg4[%c2_8, %c0_9] : memref<20x128xf32, #tpu.memory_space<vmem>>, vector<16x128xf32>
    %9 = arith.addf %7, %8 : vector<16x128xf32>
    %c3 = arith.constant 3 : index
    %c0_10 = arith.constant 0 : index
    %10 = vector.load %arg4[%c3, %c0_10] : memref<20x128xf32, #tpu.memory_space<vmem>>, vector<16x128xf32>
    %11 = arith.addf %9, %10 : vector<16x128xf32>
    %c4 = arith.constant 4 : index
    %c0_11 = arith.constant 0 : index
    %12 = vector.load %arg4[%c4, %c0_11] : memref<20x128xf32, #tpu.memory_space<vmem>>, vector<16x128xf32>
    %13 = arith.addf %11, %12 : vector<16x128xf32>
    %cst_12 = arith.constant 2.000000e-01 : f32
    %14 = vector.broadcast %cst_12 : f32 to vector<16x128xf32>
    %15 = arith.mulf %13, %14 : vector<16x128xf32>
    %c0_13 = arith.constant 0 : index
    %c0_14 = arith.constant 0 : index
    %16 = vector.load %arg3[%c0_13, %c0_14] : memref<16x128xf32, #tpu.memory_space<vmem>>, vector<16x128xf32>
    tpu.vector_store %arg3[%c0_13, %c0_14], %15 {strides = array<i32>} : memref<16x128xf32, #tpu.memory_space<vmem>>, vector<16x128xf32>,
    %c0_15 = arith.constant 0 : index
    %c0_16 = arith.constant 0 : index
    %17 = vector.load %arg1[%c0_15, %c0_16] : memref<16x128xf32, #tpu.memory_space<vmem>>, vector<16x128xf32>
    %18 = arith.subf %17, %15 : vector<16x128xf32>
    %c0_17 = arith.constant 0 : index
    %c0_18 = arith.constant 0 : index
    %19 = vector.load %arg2[%c0_17, %c0_18] : memref<16x128xf32, #tpu.memory_space<vmem>>, vector<16x128xf32>
    tpu.vector_store %arg2[%c0_17, %c0_18], %18 {strides = array<i32>} : memref<16x128xf32, #tpu.memory_space<vmem>>, vector<16x128xf32>,
    return
  }
  func.func @transform_0(%arg0: i32) -> (i32, i32) {
    %c0_i32 = arith.constant 0 : i32
    %c0_i32_0 = arith.constant 0 : i32
    return %c0_i32, %arg0 : i32, i32
  }
  func.func @transform_1(%arg0: i32) -> (i32, i32) {
    %c0_i32 = arith.constant 0 : i32
    %c0_i32_0 = arith.constant 0 : i32
    return %c0_i32, %arg0 : i32, i32
  }
  func.func @transform_2(%arg0: i32) -> (i32, i32) {
    %c0_i32 = arith.constant 0 : i32
    %c0_i32_0 = arith.constant 0 : i32
    return %c0_i32, %arg0 : i32, i32
  }
}

</mosaic_0001>

<llo_original>
// kernel: tpu_custom_call.1
$region0: #{tpu_custom_call.1}
  #allocation0 [shape = 'u32[]', space=smem, size = 0x4, offset = 0x4, fixed_abs, tag = 'smem constant byte address 0x4 - core index']
  #allocation1 [shape = 'u32[144,128]{1,0:T(1,128)}', space=vmem, size = 0x12000, scoped, tag = 'internal scratch']
  #allocation2 [shape = 'f32[20,128]{1,0:T(8,128)}', space=vmem, size = 0x3000, scoped, tag = 'scratch operand']
  %s0 = inlined_call_operand.hbm [shape: f32[16,128], index: 0, kind: input, shape index: {}]
  %s1 = inlined_call_operand.hbm [shape: f32[16,128], index: 1, kind: output, shape index: {0}]
  %s2 = inlined_call_operand.hbm [shape: f32[16,128], index: 2, kind: output, shape index: {1}]
  %3 = xla_tuple %s1, %s2
  %s4 = sld [smem:[#allocation0]]
  $region26: #{tpu_custom_call.1} parent=0
    _
  %s6 = ssub.s32 1, %s4
  %s7 = scalar_select 0, %s6, %s4
  $region1: #{tpu_custom_call.1} parent=0
    #allocation3 [shape = 'u8[8192]{0}', space=vmem, size = 0x2000, scoped, tag = 'input window, operand 0, single buffered']
    #allocation4 [shape = 's32[1]{0}', space=sflag, size = 0x4, scoped, tag = 'scoped memory for tpu_custom_call.1']
    #allocation5 [shape = 's32[1]{0}', space=sflag, size = 0x4, scoped, tag = 'scoped memory for tpu_custom_call.1']
    #allocation6 [shape = 'u8[8192]{0}', space=vmem, size = 0x2000, scoped, tag = 'output window, operand 0, single buffered']
    #allocation7 [shape = 'u8[8192]{0}', space=vmem, size = 0x2000, scoped, tag = 'output window, operand 1, single buffered']
    #allocation8 [shape = 's32[1]{0}', space=sflag, size = 0x4, scoped, tag = 'scoped memory for tpu_custom_call.1']
    %8 = vsyncpa [#allocation4], 0
    %9 = vsyncpa [#allocation5], 0
    %10 = vsyncpa [#allocation8], 0
    // Predicated region
    $region2: #{tpu_custom_call.1} parent=1 // pred_check
      _
    $region3: #{tpu_custom_call.1} parent=1 // pred_check_branch
      %12 = sbr.rel (0) target = $region5
    $region4: #{tpu_custom_call.1} parent=1 // pred_region
      %s14 = ssub.s32 256, 256
      %15 = vsyncadd [#allocation4], %s14
      %s16 = sshll.u32 [#allocation3], 4
      %s17 = int_to_ptr.vmem [resolvable:$true] %s16
      %22 = dma.hbm_to_vmem [thread:$0]  %s0, 256, %s17, [#allocation4], 128, 128, 8
    $region5: #{tpu_custom_call.1} parent=1 // pred_fallthru
      _
    // Predicated region
    $region6: #{tpu_custom_call.1} parent=1 // pred_check
      _
    $region7: #{tpu_custom_call.1} parent=1 // pred_check_branch
      %24 = sbr.rel (0) target = $region9
    $region8: #{tpu_custom_call.1} parent=1 // pred_region
      %25 = dma.done [#allocation4], 256
    $region9: #{tpu_custom_call.1} parent=1 // pred_fallthru
      _
    %26 = vst [vmem:[#allocation2] sm:$0x3] 0.0
    %27 = vst [vmem:[#allocation2 + $0x12] sm:$0x3] 0.0
    %v28 = vld [vmem:[#allocation3] sm:$0xff]
    %v29 = vld [vmem:[#allocation3 + $0x8] sm:$0xff]
    %30 = vst [vmem:[#allocation2 + $0x2] sm:$0xff] %v28
    %31 = vst [vmem:[#allocation2 + $0xa] sm:$0xff] %v29
    %v32 = vld [vmem:[#allocation2] sm:$0xff]
    %v33 = vld [vmem:[#allocation2 + $0x8] sm:$0xff]
    %v34 = vld [vmem:[#allocation2 + $0x1] sm:$0xff]
    %v35 = vld [vmem:[#allocation2 + $0x9] sm:$0xff]
    %v36 = vadd.f32 %v32, %v34
    %v37 = vadd.f32 %v33, %v35
    %v38 = vld [vmem:[#allocation2 + $0x2] sm:$0xff]
    %v39 = vld [vmem:[#allocation2 + $0xa] sm:$0xff]
    %v40 = vadd.f32 %v36, %v38
    %v41 = vadd.f32 %v37, %v39
    %v42 = vld [vmem:[#allocation2 + $0x3] sm:$0xff]
    %v43 = vld [vmem:[#allocation2 + $0xb] sm:$0xff]
    %v44 = vadd.f32 %v40, %v42
    %v45 = vadd.f32 %v41, %v43
    %v46 = vld [vmem:[#allocation2 + $0x4] sm:$0xff]
    %v47 = vld [vmem:[#allocation2 + $0xc] sm:$0xff]
    %v48 = vadd.f32 %v44, %v46
    %v49 = vadd.f32 %v45, %v47
    %v50 = vmul.f32 %v48, 0.2
    %v51 = vmul.f32 %v49, 0.2
    %52 = vst [vmem:[#allocation7] sm:$0xff] %v50
    %53 = vst [vmem:[#allocation7 + $0x8] sm:$0xff] %v51
    %v54 = vld [vmem:[#allocation3] sm:$0xff]
    %v55 = vld [vmem:[#allocation3 + $0x8] sm:$0xff]
    %v56 = vsub.f32 %v54, %v50
    %v57 = vsub.f32 %v55, %v51
    %58 = vst [vmem:[#allocation6] sm:$0xff] %v56
    %59 = vst [vmem:[#allocation6 + $0x8] sm:$0xff] %v57
    // Predicated region
    $region10: #{tpu_custom_call.1} parent=1 // pred_check
      _
    $region11: #{tpu_custom_call.1} parent=1 // pred_check_branch
      %61 = sbr.rel (0) target = $region13
    $region12: #{tpu_custom_call.1} parent=1 // pred_region
      %s63 = ssub.s32 256, 256
      %64 = vsyncadd [#allocation5], %s63
      %s65 = sshll.u32 [#allocation6], 4
      %s66 = int_to_ptr.vmem [resolvable:$true] %s65
      %71 = dma.vmem_to_hbm [thread:$0]  %s66, 256, %s1, [#allocation5], 128, 128, 8
    $region13: #{tpu_custom_call.1} parent=1 // pred_fallthru
      _
    // Predicated region
    $region14: #{tpu_custom_call.1} parent=1 // pred_check
      _
    $region15: #{tpu_custom_call.1} parent=1 // pred_check_branch
      %73 = sbr.rel (0) target = $region17
    $region16: #{tpu_custom_call.1} parent=1 // pred_region
      %s75 = ssub.s32 256, 256
      %76 = vsyncadd [#allocation8], %s75
      %s77 = sshll.u32 [#allocation7], 4
      %s78 = int_to_ptr.vmem [resolvable:$true] %s77
      %83 = dma.vmem_to_hbm [thread:$0]  %s78, 256, %s2, [#allocation8], 128, 128, 8
    $region17: #{tpu_custom_call.1} parent=1 // pred_fallthru
      _
    // Predicated region
    $region18: #{tpu_custom_call.1} parent=1 // pred_check
      _
    $region19: #{tpu_custom_call.1} parent=1 // pred_check_branch
      %85 = sbr.rel (0) target = $region21
    $region20: #{tpu_custom_call.1} parent=1 // pred_region
      %86 = dma.done [#allocation5], 256
    $region21: #{tpu_custom_call.1} parent=1 // pred_fallthru
      _
    // Predicated region
    $region22: #{tpu_custom_call.1} parent=1 // pred_check
      _
    $region23: #{tpu_custom_call.1} parent=1 // pred_check_branch
      %88 = sbr.rel (0) target = $region25
    $region24: #{tpu_custom_call.1} parent=1 // pred_region
      %89 = dma.done [#allocation8], 256
    $region25: #{tpu_custom_call.1} parent=1 // pred_fallthru
      _
    %90 = vsyncpa [#allocation4], 1
    %91 = vsyncpa [#allocation5], 1
    %92 = vsyncpa [#allocation8], 1

</llo_original>
